<compile_context>
chip_gen: v7x
topology: tpu7x:2x2x1
jax: 0.10.0
libtpu: 0.0.40
codegen_flags: <defaults>
</compile_context>

<pallas_src>
from functools import partial

import numpy as np
import jax
import jax.numpy as jnp
from jax.experimental import pallas as pl
from jax.experimental.pallas import tpu as pltpu


# --------------------------------------------------------------------------- #
# Kernel
# --------------------------------------------------------------------------- #
def _ode_conv_relu_residual_kernel(x_ref, bw_ref, b_ref, dt_ref, o_ref,
                                   xpad_ref, acc_ref):
    # x_ref   : (Nb, Hp, L) f32   input block; L = fold*W*C lanes
    # bw_ref  : (3, L, L)   bf16  packed banded conv weights (resident)
    # b_ref   : (1, L)      f32   bias tiled across fold*W (resident)
    # dt_ref  : (1,)        f32   SMEM scalar (ODE step size)
    # o_ref   : (Nb, Hp, L)       output block
    # xpad_ref: (Nb, Hp+2, L) bf16 scratch: zero halo rows + one bf16 x copy
    # acc_ref : (Nb*Hp, L)  f32   conv accumulator
    Nb, Hp, L = x_ref.shape

    x = x_ref[...]                                   # f32, reused by residual

    # One bf16 cast, one padded copy.  H-direction SAME padding = the two
    # zero halo rows (per sample); W-direction padding lives inside the band
    # matrices.  No concat shift-copies are materialized.
    zero_row = jnp.zeros((Nb, 1, L), xpad_ref.dtype)
    xpad_ref[:, 0:1, :] = zero_row
    xpad_ref[:, Hp + 1:Hp + 2, :] = zero_row
    xpad_ref[:, 1:Hp + 1, :] = x.astype(xpad_ref.dtype)

    # 3x3 conv == 3 MXU matmuls (M = Nb*Hp, K = N = L) fed from static
    # sublane-offset slices of the padded scratch, bf16 operands with f32
    # accumulation into a VMEM scratch ref (in-place accumulate on v7x).
    acc_ref[...] = jnp.dot(
        xpad_ref[:, 0:Hp, :].reshape(Nb * Hp, L), bw_ref[0],
        preferred_element_type=jnp.float32)
    acc_ref[...] += jnp.dot(
        xpad_ref[:, 1:Hp + 1, :].reshape(Nb * Hp, L), bw_ref[1],
        preferred_element_type=jnp.float32)
    acc_ref[...] += jnp.dot(
        xpad_ref[:, 2:Hp + 2, :].reshape(Nb * Hp, L), bw_ref[2],
        preferred_element_type=jnp.float32)

    act = jnp.maximum(acc_ref[...] + b_ref[...], 0.0)   # bias + ReLU (f32 VPU)
    dt = dt_ref[0]                                       # runtime SMEM scalar
    y = x.reshape(Nb * Hp, L) + dt * act                 # y = x + dt*layer(x)
    o_ref[...] = y.reshape(Nb, Hp, L).astype(o_ref.dtype)


# --------------------------------------------------------------------------- #
# Wrapper helpers
# --------------------------------------------------------------------------- #
def _is_v7x():
    try:
        return "v7" in jax.devices()[0].device_kind.lower()
    except Exception:
        return False


def _pick_fold(H, WC):
    """How many H rows to pack into the lane axis so fold*W*C % 128 == 0."""
    if WC % 128 == 0:
        return 1
    for fold in range(2, 9):
        if H % fold == 0 and (fold * WC) % 128 == 0:
            return fold
    return 1   # correct fallback, just not lane-dense


def _build_packed_banded_weights(weight_hwio, W, fold):
    """Fold kw taps, W-direction SAME padding and the H-row packing into
    three band matrices (one per pack shift s in {-1, 0, +1}):

      bw[s+1, p_in*W*Cin + w_in*Cin + ci, p_out*W*Cout + w_out*Cout + co]
        = weight[kh, kw, ci, co]
    with kw = w_in - w_out + 1 (|.| <= 1) and kh recovered from
    o = p_out + kh - 1,  s = o // fold,  p_in = o - s*fold.
    Built once per layer on the host (numpy), weight-sized.
    """
    w = np.asarray(weight_hwio, dtype=np.float32)
    KH, KW, Cin, Cout = w.shape
    assert KH == 3 and KW == 3
    Lin, Lout = fold * W * Cin, fold * W * Cout
    bw = np.zeros((3, Lin, Lout), np.float32)
    for p_out in range(fold):
        for kh in range(KH):
            o = p_out + kh - (KH // 2)      # absolute row offset around the pack
            s = o // fold                    # pack shift in {-1, 0, +1}
            p_in = o - s * fold              # row within the source pack
            for w_out in range(W):
                for kw in range(KW):
                    w_in = w_out + kw - (KW // 2)
                    if 0 <= w_in < W:
                        bw[s + 1,
                           (p_in * W + w_in) * Cin:(p_in * W + w_in + 1) * Cin,
                           (p_out * W + w_out) * Cout:(p_out * W + w_out + 1) * Cout,
                           ] = w[kh, kw]
    return bw


def precompute_ode_block_params(weight_hwio, bias, H, W):
    """Host-side, once per layer: banded bf16 weights + tiled f32 bias row.

    torchbraid calls the same step layer many times per time sweep; build
    these once and pass them to ode_block_forward(_nhwc) via `params=`.
    """
    C = weight_hwio.shape[2]
    fold = _pick_fold(H, W * C)
    bw = jnp.asarray(_build_packed_banded_weights(weight_hwio, W, fold),
                     dtype=jnp.bfloat16)                        # (3, L, L)
    b_row = jnp.asarray(
        np.tile(np.asarray(bias, np.float32), fold * W).reshape(1, fold * W * C))
    return bw, b_row, fold


def _pick_block_n(N, elems_per_batch, *, is_v7x):
    """Batch elements per grid step, with in-kernel temporaries accounted for.

    Live VMEM per f32 element of one pipelined step is ~32 B:
      in (4 B) + out (4 B), each double-buffered (=16), bf16 padded scratch
      (2), f32 accumulator (4), body temporaries act/y/casts (~10).
    Budget: 16 MiB on 128 MiB-VMEM parts (v5e/v6e), 8 MiB on v7x (64 MiB).
    """
    bytes_per_batch = elems_per_batch * 32
    budget = (8 << 20) if is_v7x else (16 << 20)
    fits = [d for d in range(1, N + 1)
            if N % d == 0 and d * bytes_per_batch <= budget] or [1]
    nb = max(fits)
    if is_v7x and N // nb < 2:
        # 2 TensorCores: prefer >= 2 (ideally an even number of) grid steps.
        smaller = ([d for d in fits if N // d >= 2 and (N // d) % 2 == 0]
                   or [d for d in fits if N // d >= 2])
        if smaller:
            nb = max(smaller)
    return nb


# --------------------------------------------------------------------------- #
# Forward
# --------------------------------------------------------------------------- #
@partial(jax.jit, static_argnames=("fold", "out_dtype"))
def _ode_block_nhwc_impl(x_nhwc, bw, b_row, dt, *, fold, out_dtype):
    N, H, W, C = x_nhwc.shape
    assert H % fold == 0
    Hp = H // fold
    L = fold * W * C

    x_packed = x_nhwc.reshape(N, Hp, L)        # free row-major reshape

    is_v7x = _is_v7x()
    Nb = _pick_block_n(N, Hp * L, is_v7x=is_v7x)
    grid = (N // Nb,)

    dt_arr = jnp.reshape(dt, (1,)).astype(jnp.float32)   # SMEM runtime scalar

    cost = pl.CostEstimate(
        flops=2 * 3 * N * Hp * L * L,
        transcendentals=0,
        bytes_accessed=2 * N * Hp * L * 4 + 3 * L * L * 2 + L * 4,
    )

    out = pl.pallas_call(
        _ode_conv_relu_residual_kernel,
        out_shape=jax.ShapeDtypeStruct((N, Hp, L), out_dtype),
        grid_spec=pltpu.PrefetchScalarGridSpec(
            num_scalar_prefetch=0,
            grid=grid,
            in_specs=[
                pl.BlockSpec((Nb, Hp, L), lambda n: (n, 0, 0)),
                pl.BlockSpec((3, L, L), lambda n: (0, 0, 0)),        # resident
                pl.BlockSpec((1, L), lambda n: (0, 0)),              # resident
                pl.BlockSpec(memory_space=pltpu.MemorySpace.SMEM),   # dt
            ],
            out_specs=pl.BlockSpec((Nb, Hp, L), lambda n: (n, 0, 0)),
            scratch_shapes=[
                pltpu.VMEM((Nb, Hp + 2, L), jnp.bfloat16),  # padded bf16 x
                pltpu.VMEM((Nb * Hp, L), jnp.float32),      # conv accumulator
            ],
        ),
        compiler_params=pltpu.CompilerParams(
            dimension_semantics=("parallel",),
            vmem_limit_bytes=(32 << 20) if is_v7x else (64 << 20),
        ),
        cost_estimate=cost,
    )(x_packed, bw, b_row, dt_arr)

    return out.reshape(N, H, W, C)             # free row-major reshape back


def ode_block_forward_nhwc(x_nhwc, weight_hwio, bias, dt, *, params=None):
    """ODEBlock forward on NHWC input (no layout passes outside the kernel).

    Pass `params=precompute_ode_block_params(...)` when the layer is reused
    across many ODE steps so the banded-weight build is out of the hot path.
    If the surrounding net runs bf16 activations, output dtype follows the
    input dtype, so feeding bf16 halves the output HBM traffic.
    """
    N, H, W, C = x_nhwc.shape
    KH, KW, Cin, Cout = weight_hwio.shape
    assert Cin == C and Cout == C, "residual add requires Cin == Cout == C"
    assert KH == 3 and KW == 3, "canonical torchbraid step layer uses a 3x3 conv"
    if params is None:
        params = precompute_ode_block_params(weight_hwio, bias, H, W)
    bw, b_row, fold = params
    return _ode_block_nhwc_impl(x_nhwc, bw, b_row, jnp.asarray(dt, jnp.float32),
                                fold=fold, out_dtype=x_nhwc.dtype)


def ode_block_forward(x_nchw, weight_hwio, bias, dt, *, params=None):
    """ODEBlock forward, PyTorch NCHW convention.  Returns (N, C, H, W).

    The two transposes below are out-of-kernel layout passes; keep
    activations NHWC across a layer-parallel time sweep and call
    `ode_block_forward_nhwc` directly to avoid them in the hot path.
    """
    x_nhwc = jnp.transpose(x_nchw, (0, 2, 3, 1))
    y_nhwc = ode_block_forward_nhwc(x_nhwc, weight_hwio, bias, dt, params=params)
    return jnp.transpose(y_nhwc, (0, 3, 1, 2))


# --------------------------------------------------------------------------- #
# Pure-JAX reference (for the correctness check)
# --------------------------------------------------------------------------- #
def _reference(x_nchw, weight_hwio, bias, dt):
    x_nhwc = jnp.transpose(x_nchw, (0, 2, 3, 1))
    conv = jax.lax.conv_general_dilated(
        x_nhwc, weight_hwio,
        window_strides=(1, 1), padding="SAME",
        dimension_numbers=("NHWC", "HWIO", "NHWC"),
    ) + bias
    y = x_nhwc + dt * jnp.maximum(conv, 0.0)
    return jnp.transpose(y, (0, 3, 1, 2))


if __name__ == "__main__":
    key = jax.random.PRNGKey(0)
    k_x, k_w, k_b = jax.random.split(key, 3)

    N, C, H, W = 2, 4, 16, 16
    KH = KW = 3
    dt = 0.1

    x = jax.random.normal(k_x, (N, C, H, W), dtype=jnp.float32)
    weight = 0.1 * jax.random.normal(k_w, (KH, KW, C, C), dtype=jnp.float32)
    bias = 0.1 * jax.random.normal(k_b, (C,), dtype=jnp.float32)

    # Banded weights built once and reused (hoisted out of the per-step path).
    params = precompute_ode_block_params(weight, bias, H, W)

    out = ode_block_forward(x, weight, bias, dt, params=params)
    out = jax.block_until_ready(out)

    ref = _reference(x, weight, bias, dt)
    assert out.shape == (N, C, H, W)
    # bf16 MXU operands (f32 accumulate) => tolerance loosened vs pure f32.
    max_err = jnp.max(jnp.abs(out - ref))
    assert jnp.allclose(out, ref, atol=1e-2, rtol=1e-2), (
        f"mismatch vs reference (max abs err {max_err})")

    print("KERNEL_OK")
</pallas_src>

<mosaic_0001>
module attributes {stable_mosaic.version = 11 : i64} {
  func.func @_ode_conv_relu_residual_kernel(%arg0: i32, %arg1: memref<2x8x128xf32, #tpu.memory_space<vmem>>, %arg2: memref<3x128x128xbf16, #tpu.memory_space<vmem>>, %arg3: memref<1x128xf32, #tpu.memory_space<vmem>>, %arg4: memref<1xf32, #tpu.memory_space<smem>>, %arg5: memref<2x8x128xf32, #tpu.memory_space<vmem>>, %arg6: memref<2x10x128xbf16, #tpu.memory_space<vmem>>, %arg7: memref<16x128xf32, #tpu.memory_space<vmem>>) attributes {dimension_semantics = [#tpu.dimension_semantics<parallel>], iteration_bounds = array<i64: 1>, scalar_prefetch = 0 : i64, scratch_operands = 2 : i64, tpu.core_type = #tpu.core_type<tc>, window_params = [{transform_indices = @transform_0, window_bounds = array<i64: 2, 8, 128>}, {pipeline_mode = #tpu.pipeline_mode<synchronous>, transform_indices = @transform_1, window_bounds = array<i64: 3, 128, 128>}, {pipeline_mode = #tpu.pipeline_mode<synchronous>, transform_indices = @transform_2, window_bounds = array<i64: 1, 128>}, {transform_indices = @transform_3, window_bounds = array<i64: 1>}, {transform_indices = @transform_4, window_bounds = array<i64: 2, 8, 128>}]} {
    %c0 = arith.constant 0 : index
    %c0_0 = arith.constant 0 : index
    %c0_1 = arith.constant 0 : index
    %0 = vector.load %arg1[%c0, %c0_0, %c0_1] : memref<2x8x128xf32, #tpu.memory_space<vmem>>, vector<2x8x128xf32>
    %cst = arith.constant 0.000000e+00 : bf16
    %1 = vector.broadcast %cst : bf16 to vector<2x1x128xbf16>
    %c0_2 = arith.constant 0 : index
    %c0_3 = arith.constant 0 : index
    %c0_4 = arith.constant 0 : index
    %2 = vector.load %arg6[%c0_2, %c0_3, %c0_4] : memref<2x10x128xbf16, #tpu.memory_space<vmem>>, vector<2x1x128xbf16>
    tpu.vector_store %arg6[%c0_2, %c0_3, %c0_4], %1 {strides = array<i32>} : memref<2x10x128xbf16, #tpu.memory_space<vmem>>, vector<2x1x128xbf16>,
    %c0_5 = arith.constant 0 : index
    %c9 = arith.constant 9 : index
    %c0_6 = arith.constant 0 : index
    %3 = vector.load %arg6[%c0_5, %c9, %c0_6] : memref<2x10x128xbf16, #tpu.memory_space<vmem>>, vector<2x1x128xbf16>
    tpu.vector_store %arg6[%c0_5, %c9, %c0_6], %1 {strides = array<i32>} : memref<2x10x128xbf16, #tpu.memory_space<vmem>>, vector<2x1x128xbf16>,
    %4 = arith.truncf %0 : vector<2x8x128xf32> to vector<2x8x128xbf16>
    %c0_7 = arith.constant 0 : index
    %c1 = arith.constant 1 : index
    %c0_8 = arith.constant 0 : index
    %5 = vector.load %arg6[%c0_7, %c1, %c0_8] : memref<2x10x128xbf16, #tpu.memory_space<vmem>>, vector<2x8x128xbf16>
    tpu.vector_store %arg6[%c0_7, %c1, %c0_8], %4 {strides = array<i32>} : memref<2x10x128xbf16, #tpu.memory_space<vmem>>, vector<2x8x128xbf16>,
    %c0_9 = arith.constant 0 : index
    %c0_10 = arith.constant 0 : index
    %c0_11 = arith.constant 0 : index
    %6 = vector.load %arg6[%c0_9, %c0_10, %c0_11] : memref<2x10x128xbf16, #tpu.memory_space<vmem>>, vector<2x8x128xbf16>
    %7 = vector.shape_cast %6 : vector<2x8x128xbf16> to vector<16x128xbf16>
    %c0_12 = arith.constant 0 : index
    %c0_13 = arith.constant 0 : index
    %c0_14 = arith.constant 0 : index
    %8 = vector.load %arg2[%c0_12, %c0_13, %c0_14] : memref<3x128x128xbf16, #tpu.memory_space<vmem>>, vector<1x128x128xbf16>
    %9 = vector.shape_cast %8 : vector<1x128x128xbf16> to vector<128x128xbf16>
    %cst_15 = arith.constant dense<0.000000e+00> : vector<16x128xf32>
    %10 = tpu.matmul %7, %9, %cst_15 {dimension_numbers = #tpu.dot_dimension_numbers<[1], [0], [0], [1], [0, 0, 1, 1], [], []>} : vector<16x128xbf16>, vector<128x128xbf16>, vector<16x128xf32> -> vector<16x128xf32>
    %c0_16 = arith.constant 0 : index
    %c0_17 = arith.constant 0 : index
    %11 = vector.load %arg7[%c0_16, %c0_17] : memref<16x128xf32, #tpu.memory_space<vmem>>, vector<16x128xf32>
    tpu.vector_store %arg7[%c0_16, %c0_17], %10 {strides = array<i32>} : memref<16x128xf32, #tpu.memory_space<vmem>>, vector<16x128xf32>,
    %c0_18 = arith.constant 0 : index
    %c0_19 = arith.constant 0 : index
    %12 = vector.load %arg7[%c0_18, %c0_19] : memref<16x128xf32, #tpu.memory_space<vmem>>, vector<16x128xf32>
    %c0_20 = arith.constant 0 : index
    %c1_21 = arith.constant 1 : index
    %c0_22 = arith.constant 0 : index
    %13 = vector.load %arg6[%c0_20, %c1_21, %c0_22] : memref<2x10x128xbf16, #tpu.memory_space<vmem>>, vector<2x8x128xbf16>
    %14 = vector.shape_cast %13 : vector<2x8x128xbf16> to vector<16x128xbf16>
    %c1_23 = arith.constant 1 : index
    %c0_24 = arith.constant 0 : index
    %c0_25 = arith.constant 0 : index
    %15 = vector.load %arg2[%c1_23, %c0_24, %c0_25] : memref<3x128x128xbf16, #tpu.memory_space<vmem>>, vector<1x128x128xbf16>
    %16 = vector.shape_cast %15 : vector<1x128x128xbf16> to vector<128x128xbf16>
    %cst_26 = arith.constant dense<0.000000e+00> : vector<16x128xf32>
    %17 = tpu.matmul %14, %16, %cst_26 {dimension_numbers = #tpu.dot_dimension_numbers<[1], [0], [0], [1], [0, 0, 1, 1], [], []>} : vector<16x128xbf16>, vector<128x128xbf16>, vector<16x128xf32> -> vector<16x128xf32>
    %18 = arith.addf %12, %17 : vector<16x128xf32>
    %c0_27 = arith.constant 0 : index
    %c0_28 = arith.constant 0 : index
    %19 = vector.load %arg7[%c0_27, %c0_28] : memref<16x128xf32, #tpu.memory_space<vmem>>, vector<16x128xf32>
    tpu.vector_store %arg7[%c0_27, %c0_28], %18 {strides = array<i32>} : memref<16x128xf32, #tpu.memory_space<vmem>>, vector<16x128xf32>,
    %c0_29 = arith.constant 0 : index
    %c0_30 = arith.constant 0 : index
    %20 = vector.load %arg7[%c0_29, %c0_30] : memref<16x128xf32, #tpu.memory_space<vmem>>, vector<16x128xf32>
    %c0_31 = arith.constant 0 : index
    %c2 = arith.constant 2 : index
    %c0_32 = arith.constant 0 : index
    %21 = vector.load %arg6[%c0_31, %c2, %c0_32] : memref<2x10x128xbf16, #tpu.memory_space<vmem>>, vector<2x8x128xbf16>
    %22 = vector.shape_cast %21 : vector<2x8x128xbf16> to vector<16x128xbf16>
    %c2_33 = arith.constant 2 : index
    %c0_34 = arith.constant 0 : index
    %c0_35 = arith.constant 0 : index
    %23 = vector.load %arg2[%c2_33, %c0_34, %c0_35] : memref<3x128x128xbf16, #tpu.memory_space<vmem>>, vector<1x128x128xbf16>
    %24 = vector.shape_cast %23 : vector<1x128x128xbf16> to vector<128x128xbf16>
    %cst_36 = arith.constant dense<0.000000e+00> : vector<16x128xf32>
    %25 = tpu.matmul %22, %24, %cst_36 {dimension_numbers = #tpu.dot_dimension_numbers<[1], [0], [0], [1], [0, 0, 1, 1], [], []>} : vector<16x128xbf16>, vector<128x128xbf16>, vector<16x128xf32> -> vector<16x128xf32>
    %26 = arith.addf %20, %25 : vector<16x128xf32>
    %c0_37 = arith.constant 0 : index
    %c0_38 = arith.constant 0 : index
    %27 = vector.load %arg7[%c0_37, %c0_38] : memref<16x128xf32, #tpu.memory_space<vmem>>, vector<16x128xf32>
    tpu.vector_store %arg7[%c0_37, %c0_38], %26 {strides = array<i32>} : memref<16x128xf32, #tpu.memory_space<vmem>>, vector<16x128xf32>,
    %c0_39 = arith.constant 0 : index
    %c0_40 = arith.constant 0 : index
    %28 = vector.load %arg7[%c0_39, %c0_40] : memref<16x128xf32, #tpu.memory_space<vmem>>, vector<16x128xf32>
    %c0_41 = arith.constant 0 : index
    %c0_42 = arith.constant 0 : index
    %29 = vector.load %arg3[%c0_41, %c0_42] : memref<1x128xf32, #tpu.memory_space<vmem>>, vector<1x128xf32>
    %30 = vector.broadcast %29 : vector<1x128xf32> to vector<16x128xf32>
    %31 = arith.addf %28, %30 : vector<16x128xf32>
    %cst_43 = arith.constant 0.000000e+00 : f32
    %32 = vector.broadcast %cst_43 : f32 to vector<16x128xf32>
    %33 = arith.maximumf %31, %32 : vector<16x128xf32>
    %c0_44 = arith.constant 0 : index
    %34 = memref.load %arg4[%c0_44] : memref<1xf32, #tpu.memory_space<smem>>
    %35 = vector.shape_cast %0 : vector<2x8x128xf32> to vector<16x128xf32>
    %36 = vector.broadcast %34 : f32 to vector<16x128xf32>
    %37 = arith.mulf %36, %33 : vector<16x128xf32>
    %38 = arith.addf %35, %37 : vector<16x128xf32>
    %39 = vector.shape_cast %38 : vector<16x128xf32> to vector<2x8x128xf32>
    %c0_45 = arith.constant 0 : index
    %c0_46 = arith.constant 0 : index
    %c0_47 = arith.constant 0 : index
    %40 = vector.load %arg5[%c0_45, %c0_46, %c0_47] : memref<2x8x128xf32, #tpu.memory_space<vmem>>, vector<2x8x128xf32>
    tpu.vector_store %arg5[%c0_45, %c0_46, %c0_47], %39 {strides = array<i32>} : memref<2x8x128xf32, #tpu.memory_space<vmem>>, vector<2x8x128xf32>,
    return
  }
  func.func @transform_0(%arg0: i32) -> (i32, i32, i32) {
    %c0_i32 = arith.constant 0 : i32
    %c0_i32_0 = arith.constant 0 : i32
    %c0_i32_1 = arith.constant 0 : i32
    return %arg0, %c0_i32, %c0_i32_0 : i32, i32, i32
  }
  func.func @transform_1(%arg0: i32) -> (i32, i32, i32) {
    %c0_i32 = arith.constant 0 : i32
    %c0_i32_0 = arith.constant 0 : i32
    %c0_i32_1 = arith.constant 0 : i32
    %c0_i32_2 = arith.constant 0 : i32
    return %c0_i32, %c0_i32_0, %c0_i32_1 : i32, i32, i32
  }
  func.func @transform_2(%arg0: i32) -> (i32, i32) {
    %c0_i32 = arith.constant 0 : i32
    %c0_i32_0 = arith.constant 0 : i32
    %c0_i32_1 = arith.constant 0 : i32
    return %c0_i32, %c0_i32_0 : i32, i32
  }
  func.func @transform_3(%arg0: i32) -> i32 {
    %c0_i32 = arith.constant 0 : i32
    %c0_i32_0 = arith.constant 0 : i32
    return %c0_i32 : i32
  }
  func.func @transform_4(%arg0: i32) -> (i32, i32, i32) {
    %c0_i32 = arith.constant 0 : i32
    %c0_i32_0 = arith.constant 0 : i32
    %c0_i32_1 = arith.constant 0 : i32
    return %arg0, %c0_i32, %c0_i32_0 : i32, i32, i32
  }
}

</mosaic_0001>

<llo_original>
// kernel: _ode_block_nhwc_impl.1
$region0: #{_ode_block_nhwc_impl.1}
  #allocation0 [shape = 'u32[]', space=smem, size = 0x4, offset = 0x4, fixed_abs, tag = 'smem constant byte address 0x4 - core index']
  #allocation1 [shape = 'u32[144,128]{1,0:T(1,128)}', space=vmem, size = 0x12000, scoped, tag = 'internal scratch']
  #allocation2 [shape = 'bf16[2,10,128]{2,1,0:T(8,128)(2,1)}', space=vmem, size = 0x2000, scoped, tag = 'scratch operand']
  #allocation3 [shape = 'f32[16,128]{1,0:T(8,128)}', space=vmem, size = 0x2000, scoped, tag = 'scratch operand']
  #allocation4 [shape = 'f32[1]{0:T(128)S(6)}', space=smem, size = 0x200, scoped, tag = 'scoped memory for _ode_block_nhwc_impl.1']
  %s0 = inlined_call_operand.hbm [shape: f32[2,8,128], index: 0, kind: input, shape index: {}]
  %s1 = inlined_call_operand.hbm [shape: bf16[3,128,128], index: 1, kind: input, shape index: {}]
  %s2 = inlined_call_operand.hbm [shape: f32[1,128], index: 2, kind: input, shape index: {}]
  %s3 = inlined_call_operand.<no memory space> [shape: f32[1], index: 3, kind: input, shape index: {}]
  %s4 = inlined_call_operand.hbm [shape: f32[2,8,128], index: 4, kind: output, shape index: {}]
  %s5 = sld [smem:[#allocation0]]
  $region38: #{_ode_block_nhwc_impl.1} parent=0
    _
  %s7 = ssub.s32 1, %s5
  %s8 = scalar_select 0, %s7, %s5
  %9 = sst [smem:[#allocation4]] %s3
  $region1: #{_ode_block_nhwc_impl.1} parent=0
    #allocation5 [shape = 'u8[8192]{0}', space=vmem, size = 0x2000, scoped, tag = 'input window, operand 0, single buffered']
    #allocation6 [shape = 's32[1]{0}', space=sflag, size = 0x4, scoped, tag = 'scoped memory for _ode_block_nhwc_impl.1']
    #allocation7 [shape = 's32[1]{0}', space=sflag, size = 0x4, scoped, tag = 'scoped memory for _ode_block_nhwc_impl.1']
    #allocation8 [shape = 'u8[98304]{0}', space=vmem, size = 0x18000, scoped, tag = 'input window, operand 1, single buffered']
    #allocation9 [shape = 's32[1]{0}', space=sflag, size = 0x4, scoped, tag = 'scoped memory for _ode_block_nhwc_impl.1']
    #allocation10 [shape = 'u8[512]{0}', space=vmem, size = 0x400, scoped, tag = 'input window, operand 2, single buffered']
    #allocation11 [shape = 'u8[8192]{0}', space=vmem, size = 0x2000, scoped, tag = 'output window, operand 0, single buffered']
    %10 = vsyncpa [#allocation6], 0
    %11 = vsyncpa [#allocation9], 0
    %12 = vsyncpa [#allocation7], 0
    // Predicated region
    $region2: #{_ode_block_nhwc_impl.1} parent=1 // pred_check
      _
    $region3: #{_ode_block_nhwc_impl.1} parent=1 // pred_check_branch
      %14 = sbr.rel (0) target = $region5
    $region4: #{_ode_block_nhwc_impl.1} parent=1 // pred_region
      %s16 = ssub.s32 256, 256
      %17 = vsyncadd [#allocation6], %s16
      %s18 = sshll.u32 [#allocation5], 4
      %s19 = int_to_ptr.vmem [resolvable:$true] %s18
      %24 = dma.hbm_to_vmem [thread:$0]  %s0, 256, %s19, [#allocation6], 128, 128, 8
    $region5: #{_ode_block_nhwc_impl.1} parent=1 // pred_fallthru
      _
    // Predicated region
    $region6: #{_ode_block_nhwc_impl.1} parent=1 // pred_check
      _
    $region7: #{_ode_block_nhwc_impl.1} parent=1 // pred_check_branch
      %26 = sbr.rel (0) target = $region9
    $region8: #{_ode_block_nhwc_impl.1} parent=1 // pred_region
      %s28 = ssub.s32 3072, 3072
      %29 = vsyncadd [#allocation9], %s28
      %s30 = sshll.u32 [#allocation8], 4
      %s31 = int_to_ptr.vmem [resolvable:$true] %s30
      %36 = dma.hbm_to_vmem [thread:$0]  %s1, 3072, %s31, [#allocation9], 64, 64, 4
    $region9: #{_ode_block_nhwc_impl.1} parent=1 // pred_fallthru
      _
    // Predicated region
    $region10: #{_ode_block_nhwc_impl.1} parent=1 // pred_check
      _
    $region11: #{_ode_block_nhwc_impl.1} parent=1 // pred_check_branch
      %38 = sbr.rel (0) target = $region13
    $region12: #{_ode_block_nhwc_impl.1} parent=1 // pred_region
      %s40 = ssub.s32 16, 16
      %41 = vsyncadd [#allocation9], %s40
      %s43 = sshll.u32 [#allocation10], 4
      %s44 = int_to_ptr.vmem [resolvable:$true] %s43
      %46 = dma.hbm_to_vmem [thread:$0]  %s2, 16, %s44, [#allocation9]
    $region13: #{_ode_block_nhwc_impl.1} parent=1 // pred_fallthru
      _
    // Predicated region
    $region14: #{_ode_block_nhwc_impl.1} parent=1 // pred_check
      _
    $region15: #{_ode_block_nhwc_impl.1} parent=1 // pred_check_branch
      %48 = sbr.rel (0) target = $region17
    $region16: #{_ode_block_nhwc_impl.1} parent=1 // pred_region
      _
    $region17: #{_ode_block_nhwc_impl.1} parent=1 // pred_fallthru
      _
    // Predicated region
    $region18: #{_ode_block_nhwc_impl.1} parent=1 // pred_check
      _
    $region19: #{_ode_block_nhwc_impl.1} parent=1 // pred_check_branch
      %50 = sbr.rel (0) target = $region21
    $region20: #{_ode_block_nhwc_impl.1} parent=1 // pred_region
      %51 = dma.done [#allocation6], 256
    $region21: #{_ode_block_nhwc_impl.1} parent=1 // pred_fallthru
      _
    // Predicated region
    $region22: #{_ode_block_nhwc_impl.1} parent=1 // pred_check
      _
    $region23: #{_ode_block_nhwc_impl.1} parent=1 // pred_check_branch
      %53 = sbr.rel (0) target = $region25
    $region24: #{_ode_block_nhwc_impl.1} parent=1 // pred_region
      %54 = dma.done [#allocation9], 3072
    $region25: #{_ode_block_nhwc_impl.1} parent=1 // pred_fallthru
      _
    // Predicated region
    $region26: #{_ode_block_nhwc_impl.1} parent=1 // pred_check
      _
    $region27: #{_ode_block_nhwc_impl.1} parent=1 // pred_check_branch
      %56 = sbr.rel (0) target = $region29
    $region28: #{_ode_block_nhwc_impl.1} parent=1 // pred_region
      %57 = dma.done [#allocation9], 16
    $region29: #{_ode_block_nhwc_impl.1} parent=1 // pred_fallthru
      _
    %v59 = vld [vmem:[#allocation5] sm:$0xff]
    %v60 = vld [vmem:[#allocation5 + $0x8] sm:$0xff]
    %vm61 = vcmask 1040384
    %vm62 = vsmask.f32 256
    %vm63 = vmand %vm61, %vm62
    %v64 = vld [vmem:[#allocation2] sm:$0x1]
    %v65 = vsel %vm63, 0, %v64
    %66 = vst [vmem:[#allocation2] sm:$0x1] %v65
    %v67 = vld [vmem:[#allocation2 + $0x8] sm:$0x1]
    %v68 = vsel %vm63, 0, %v67
    %69 = vst [vmem:[#allocation2 + $0x8] sm:$0x1] %v68
    %vm70 = vsmask.f32 7938
    %vm71 = vmand %vm61, %vm70
    %v72 = vld [vmem:[#allocation2 + $0x4] sm:$0x1]
    %v73 = vsel %vm71, 0, %v72
    %74 = vst [vmem:[#allocation2 + $0x4] sm:$0x1] %v73
    %v75 = vld [vmem:[#allocation2 + $0xc] sm:$0x1]
    %v76 = vsel %vm71, 0, %v75
    %77 = vst [vmem:[#allocation2 + $0xc] sm:$0x1] %v76
    %v78 = vpack.c.bf16 %v59, %v59
    %v79 = vpack.c.bf16 %v60, %v60
    %v82 = vunpack.c.l.b16 %v78
    %v83 = vunpack.c.l.b16 %v79
    %v84 = vpack.c.b16 %v82, %v82
    %v85 = vpack.c.b16 %v83, %v83
    %v87 = vshrl.u32 %v84, 16
    %v89 = vrot.slane %v87, 7
    %v90 = vshll.u32 %v84, 16
    %v92 = vor.u32 %v89, %v90
    %v93 = vrot.slane %v89, 4
    %v95 = vshrl.u32 %v85, 16
    %v97 = vrot.slane %v95, 7
    %v98 = vshll.u32 %v85, 16
    %v100 = vor.u32 %v97, %v98
    %v101 = vrot.slane %v97, 4
    %vm106 = vcmask 1043456
    %vm107 = vmand %vm106, %vm70
    %v108 = vld [vmem:[#allocation2] sm:$0xf]
    %v109 = vsel %vm107, %v92, %v108
    %110 = vst [vmem:[#allocation2] sm:$0xf] %v109
    %v111 = vld [vmem:[#allocation2 + $0x4] sm:$0x1]
    %v112 = vsel %vm63, %v93, %v111
    %113 = vst [vmem:[#allocation2 + $0x4] sm:$0x1] %v112
    %v114 = vld [vmem:[#allocation2 + $0x8] sm:$0xf]
    %v115 = vsel %vm107, %v100, %v114
    %116 = vst [vmem:[#allocation2 + $0x8] sm:$0xf] %v115
    %v117 = vld [vmem:[#allocation2 + $0xc] sm:$0x1]
    %v118 = vsel %vm63, %v101, %v117
    %119 = vst [vmem:[#allocation2 + $0xc] sm:$0x1] %v118
    %v120 = vld [vmem:[#allocation2] sm:$0xf]
    %v121 = vld [vmem:[#allocation2 + $0x8] sm:$0xf]
    %v122 = vld [vmem:[#allocation8] sm:$0xf]
    %v123 = vld [vmem:[#allocation8 + $0x4] sm:$0xf]
    %v124 = vld [vmem:[#allocation8 + $0x8] sm:$0xf]
    %v125 = vld [vmem:[#allocation8 + $0xc] sm:$0xf]
    %v126 = vld [vmem:[#allocation8 + $0x10] sm:$0xf]
    %v127 = vld [vmem:[#allocation8 + $0x14] sm:$0xf]
    %v128 = vld [vmem:[#allocation8 + $0x18] sm:$0xf]
    %v129 = vld [vmem:[#allocation8 + $0x1c] sm:$0xf]
    %v130 = vld [vmem:[#allocation8 + $0x20] sm:$0xf]
    %v131 = vld [vmem:[#allocation8 + $0x24] sm:$0xf]
    %v132 = vld [vmem:[#allocation8 + $0x28] sm:$0xf]
    %v133 = vld [vmem:[#allocation8 + $0x2c] sm:$0xf]
    %v134 = vld [vmem:[#allocation8 + $0x30] sm:$0xf]
    %v135 = vld [vmem:[#allocation8 + $0x34] sm:$0xf]
    %v136 = vld [vmem:[#allocation8 + $0x38] sm:$0xf]
    %v137 = vld [vmem:[#allocation8 + $0x3c] sm:$0xf]
    %v140 = vunpack.c.l.b16 %v120
    %v141 = vunpack.c.l.b16 %v121
    %v142 = vpack.c.b16 %v141, %v140
    %v160 = vunpack.c.l.b16 %v122
    %v161 = vunpack.c.l.b16 %v123
    %v162 = vunpack.c.l.b16 %v124
    %v163 = vunpack.c.l.b16 %v125
    %v164 = vunpack.c.l.b16 %v126
    %v165 = vunpack.c.l.b16 %v127
    %v166 = vunpack.c.l.b16 %v128
    %v167 = vunpack.c.l.b16 %v129
    %v168 = vunpack.c.l.b16 %v130
    %v169 = vunpack.c.l.b16 %v131
    %v170 = vunpack.c.l.b16 %v132
    %v171 = vunpack.c.l.b16 %v133
    %v172 = vunpack.c.l.b16 %v134
    %v173 = vunpack.c.l.b16 %v135
    %v174 = vunpack.c.l.b16 %v136
    %v175 = vunpack.c.l.b16 %v137
    %v176 = vpack.c.b16 %v161, %v160
    %v177 = vpack.c.b16 %v163, %v162
    %v178 = vpack.c.b16 %v165, %v164
    %v179 = vpack.c.b16 %v167, %v166
    %v180 = vpack.c.b16 %v169, %v168
    %v181 = vpack.c.b16 %v171, %v170
    %v182 = vpack.c.b16 %v173, %v172
    %v183 = vpack.c.b16 %v175, %v174
    %192 = vmatprep.subr.bf16.mxu0 0
    %193 = vmatpush1.bf16.msra.mxu0 %v176
    %194 = vmatprep.subr.bf16.mxu0 0
    %195 = vmatpush1.bf16.msra.mxu0 %v177
    %196 = vmatprep.subr.bf16.mxu0 0
    %197 = vmatpush1.bf16.msra.mxu0 %v178
    %198 = vmatprep.subr.bf16.mxu0 0
    %199 = vmatpush1.bf16.msra.mxu0 %v179
    %200 = vmatprep.subr.bf16.mxu0 0
    %201 = vmatpush1.bf16.msra.mxu0 %v180
    %202 = vmatprep.subr.bf16.mxu0 0
    %203 = vmatpush1.bf16.msra.mxu0 %v181
    %204 = vmatprep.subr.bf16.mxu0 0
    %205 = vmatpush1.bf16.msra.mxu0 %v182
    %206 = vmatprep.subr.bf16.mxu0 0
    %207 = vmatpush1.bf16.msra.mxu0 %v183
    %208 = vmatprep.subr.bf16.mxu0 0
    %209 = vmatpush1.bf16.msra.mxu0 0
    %210 = vmatprep.subr.bf16.mxu0 0
    %211 = vmatpush1.bf16.msra.mxu0 0
    %212 = vmatprep.subr.bf16.mxu0 0
    %213 = vmatpush1.bf16.msra.mxu0 0
    %214 = vmatprep.subr.bf16.mxu0 0
    %215 = vmatpush1.bf16.msra.mxu0 0
    %216 = vmatprep.subr.bf16.mxu0 0
    %217 = vmatpush1.bf16.msra.mxu0 0
    %218 = vmatprep.subr.bf16.mxu0 0
    %219 = vmatpush1.bf16.msra.mxu0 0
    %220 = vmatprep.subr.bf16.mxu0 0
    %221 = vmatpush1.bf16.msra.mxu0 0
    %222 = vmatprep.subr.bf16.mxu0 0
    %223 = vmatpush1.bf16.msra.mxu0 0
    %224 = vmatprep.mubr.bf16.mxu0 0
    %225 = vmatmul.mubr.bf16.gmra.mrb[0].mxu0 %v142
    %v226 = vpop.f32.mrb[0].mxu0
    %v227 = vadd.f32 0.0, %v226
    %v228 = vpop.f32.mrb[0].mxu0
    %v229 = vpop.f32.mrb[0].mxu0
    %v230 = vadd.f32 0.0, %v229
    %v231 = vpop.f32.mrb[0].mxu0
    %232 = vdwg.mxu0
    %233 = vst [vmem:[#allocation3] sm:$0xff] %v227
    %234 = vst [vmem:[#allocation3 + $0x8] sm:$0xff] %v230
    %v235 = vld [vmem:[#allocation3] sm:$0xff]
    %v236 = vld [vmem:[#allocation3 + $0x8] sm:$0xff]
    %v237 = vld [vmem:[#allocation2] sm:$0xf]
    %v238 = vld [vmem:[#allocation2 + $0x4] sm:$0x1]
    %v239 = vld [vmem:[#allocation2 + $0x8] sm:$0xf]
    %v240 = vld [vmem:[#allocation2 + $0xc] sm:$0x1]
    %vm241 = vsmask.f32 3328
    %vm242 = vsmask.f32 7440
    %vm243 = vmor %vm241, %vm242
    %v245 = vshrl.u32 %v237, 16
    %v247 = vrot.slane %v245, 4
    %v248 = vshll.u32 %v237, 16
    %v250 = vrot.slane %v248, 5
    %v251 = vor.u32 %v247, %v250
    %v252 = vrot.slane %v251, 4
    %v254 = vshll.u32 %v238, 16
    %v256 = vrot.slane %v254, 5
    %v257 = vsel %vm243, %v252, %v256
    %v259 = vshrl.u32 %v239, 16
    %v261 = vrot.slane %v259, 4
    %v262 = vshll.u32 %v239, 16
    %v264 = vrot.slane %v262, 5
    %v265 = vor.u32 %v261, %v264
    %v266 = vrot.slane %v265, 4
    %v268 = vshll.u32 %v240, 16
    %v270 = vrot.slane %v268, 5
    %v271 = vsel %vm243, %v266, %v270
    %s272 = scalar_lea.vmem [#allocation8], 64
    %v273 = vld [vmem:[%s272] sm:$0xf]
    %v274 = vld [vmem:[%s272 + $0x4] sm:$0xf]
    %v275 = vld [vmem:[%s272 + $0x8] sm:$0xf]
    %v276 = vld [vmem:[%s272 + $0xc] sm:$0xf]
    %v277 = vld [vmem:[%s272 + $0x10] sm:$0xf]
    %v278 = vld [vmem:[%s272 + $0x14] sm:$0xf]
    %v279 = vld [vmem:[%s272 + $0x18] sm:$0xf]
    %v280 = vld [vmem:[%s272 + $0x1c] sm:$0xf]
    %v281 = vld [vmem:[%s272 + $0x20] sm:$0xf]
    %v282 = vld [vmem:[%s272 + $0x24] sm:$0xf]
    %v283 = vld [vmem:[%s272 + $0x28] sm:$0xf]
    %v284 = vld [vmem:[%s272 + $0x2c] sm:$0xf]
    %v285 = vld [vmem:[%s272 + $0x30] sm:$0xf]
    %v286 = vld [vmem:[%s272 + $0x34] sm:$0xf]
    %v287 = vld [vmem:[%s272 + $0x38] sm:$0xf]
    %v288 = vld [vmem:[%s272 + $0x3c] sm:$0xf]
    %v289 = vunpack.c.l.b16 %v257
    %v290 = vunpack.c.l.b16 %v271
    %v291 = vpack.c.b16 %v290, %v289
    %v309 = vunpack.c.l.b16 %v273
    %v310 = vunpack.c.l.b16 %v274
    %v311 = vunpack.c.l.b16 %v275
    %v312 = vunpack.c.l.b16 %v276
    %v313 = vunpack.c.l.b16 %v277
    %v314 = vunpack.c.l.b16 %v278
    %v315 = vunpack.c.l.b16 %v279
    %v316 = vunpack.c.l.b16 %v280
    %v317 = vunpack.c.l.b16 %v281
    %v318 = vunpack.c.l.b16 %v282
    %v319 = vunpack.c.l.b16 %v283
    %v320 = vunpack.c.l.b16 %v284
    %v321 = vunpack.c.l.b16 %v285
    %v322 = vunpack.c.l.b16 %v286
    %v323 = vunpack.c.l.b16 %v287
    %v324 = vunpack.c.l.b16 %v288
    %v325 = vpack.c.b16 %v310, %v309
    %v326 = vpack.c.b16 %v312, %v311
    %v327 = vpack.c.b16 %v314, %v313
    %v328 = vpack.c.b16 %v316, %v315
    %v329 = vpack.c.b16 %v318, %v317
    %v330 = vpack.c.b16 %v320, %v319
    %v331 = vpack.c.b16 %v322, %v321
    %v332 = vpack.c.b16 %v324, %v323
    %341 = vmatprep.subr.bf16.mxu0 0
    %342 = vmatpush1.bf16.msra.mxu0 %v325
    %343 = vmatprep.subr.bf16.mxu0 0
    %344 = vmatpush1.bf16.msra.mxu0 %v326
    %345 = vmatprep.subr.bf16.mxu0 0
    %346 = vmatpush1.bf16.msra.mxu0 %v327
    %347 = vmatprep.subr.bf16.mxu0 0
    %348 = vmatpush1.bf16.msra.mxu0 %v328
    %349 = vmatprep.subr.bf16.mxu0 0
    %350 = vmatpush1.bf16.msra.mxu0 %v329
    %351 = vmatprep.subr.bf16.mxu0 0
    %352 = vmatpush1.bf16.msra.mxu0 %v330
    %353 = vmatprep.subr.bf16.mxu0 0
    %354 = vmatpush1.bf16.msra.mxu0 %v331
    %355 = vmatprep.subr.bf16.mxu0 0
    %356 = vmatpush1.bf16.msra.mxu0 %v332
    %357 = vmatprep.subr.bf16.mxu0 0
    %358 = vmatpush1.bf16.msra.mxu0 0
    %359 = vmatprep.subr.bf16.mxu0 0
    %360 = vmatpush1.bf16.msra.mxu0 0
    %361 = vmatprep.subr.bf16.mxu0 0
    %362 = vmatpush1.bf16.msra.mxu0 0
    %363 = vmatprep.subr.bf16.mxu0 0
    %364 = vmatpush1.bf16.msra.mxu0 0
    %365 = vmatprep.subr.bf16.mxu0 0
    %366 = vmatpush1.bf16.msra.mxu0 0
    %367 = vmatprep.subr.bf16.mxu0 0
    %368 = vmatpush1.bf16.msra.mxu0 0
    %369 = vmatprep.subr.bf16.mxu0 0
    %370 = vmatpush1.bf16.msra.mxu0 0
    %371 = vmatprep.subr.bf16.mxu0 0
    %372 = vmatpush1.bf16.msra.mxu0 0
    %373 = vmatprep.mubr.bf16.mxu0 0
    %374 = vmatmul.mubr.bf16.gmra.mrb[0].mxu0 %v291
    %v375 = vpop.f32.mrb[0].mxu0
    %v376 = vadd.f32 0.0, %v375
    %v377 = vpop.f32.mrb[0].mxu0
    %v378 = vpop.f32.mrb[0].mxu0
    %v379 = vadd.f32 0.0, %v378
    %v380 = vpop.f32.mrb[0].mxu0
    %381 = vdwg.mxu0
    %v382 = vadd.f32 %v235, %v376
    %v383 = vadd.f32 %v236, %v379
    %384 = vst [vmem:[#allocation3] sm:$0xff] %v382
    %385 = vst [vmem:[#allocation3 + $0x8] sm:$0xff] %v383
    %v386 = vld [vmem:[#allocation3] sm:$0xff]
    %v387 = vld [vmem:[#allocation3 + $0x8] sm:$0xff]
    %v388 = vld [vmem:[#allocation2] sm:$0xe]
    %v389 = vld [vmem:[#allocation2 + $0x4] sm:$0x1]
    %v390 = vld [vmem:[#allocation2 + $0x8] sm:$0xe]
    %v391 = vld [vmem:[#allocation2 + $0xc] sm:$0x1]
    %vm396 = vcmask 1042432
    %vm397 = vcmask 1046532
    %vm398 = vmor %vm396, %vm397
    %v399 = vrot.slane %v388, 5
    %v400 = vrot.slane %v399, 4
    %v401 = vrot.slane %v389, 5
    %v402 = vsel %vm398, %v400, %v401
    %v403 = vrot.slane %v390, 5
    %v404 = vrot.slane %v403, 4
    %v405 = vrot.slane %v391, 5
    %v406 = vsel %vm398, %v404, %v405
    %s407 = scalar_lea.vmem [#allocation8], 128
    %v408 = vld [vmem:[%s407] sm:$0xf]
    %v409 = vld [vmem:[%s407 + $0x4] sm:$0xf]
    %v410 = vld [vmem:[%s407 + $0x8] sm:$0xf]
    %v411 = vld [vmem:[%s407 + $0xc] sm:$0xf]
    %v412 = vld [vmem:[%s407 + $0x10] sm:$0xf]
    %v413 = vld [vmem:[%s407 + $0x14] sm:$0xf]
    %v414 = vld [vmem:[%s407 + $0x18] sm:$0xf]
    %v415 = vld [vmem:[%s407 + $0x1c] sm:$0xf]
    %v416 = vld [vmem:[%s407 + $0x20] sm:$0xf]
    %v417 = vld [vmem:[%s407 + $0x24] sm:$0xf]
    %v418 = vld [vmem:[%s407 + $0x28] sm:$0xf]
    %v419 = vld [vmem:[%s407 + $0x2c] sm:$0xf]
    %v420 = vld [vmem:[%s407 + $0x30] sm:$0xf]
    %v421 = vld [vmem:[%s407 + $0x34] sm:$0xf]
    %v422 = vld [vmem:[%s407 + $0x38] sm:$0xf]
    %v423 = vld [vmem:[%s407 + $0x3c] sm:$0xf]
    %v424 = vunpack.c.l.b16 %v402
    %v425 = vunpack.c.l.b16 %v406
    %v426 = vpack.c.b16 %v425, %v424
    %v444 = vunpack.c.l.b16 %v408
    %v445 = vunpack.c.l.b16 %v409
    %v446 = vunpack.c.l.b16 %v410
    %v447 = vunpack.c.l.b16 %v411
    %v448 = vunpack.c.l.b16 %v412
    %v449 = vunpack.c.l.b16 %v413
    %v450 = vunpack.c.l.b16 %v414
    %v451 = vunpack.c.l.b16 %v415
    %v452 = vunpack.c.l.b16 %v416
    %v453 = vunpack.c.l.b16 %v417
    %v454 = vunpack.c.l.b16 %v418
    %v455 = vunpack.c.l.b16 %v419
    %v456 = vunpack.c.l.b16 %v420
    %v457 = vunpack.c.l.b16 %v421
    %v458 = vunpack.c.l.b16 %v422
    %v459 = vunpack.c.l.b16 %v423
    %v460 = vpack.c.b16 %v445, %v444
    %v461 = vpack.c.b16 %v447, %v446
    %v462 = vpack.c.b16 %v449, %v448
    %v463 = vpack.c.b16 %v451, %v450
    %v464 = vpack.c.b16 %v453, %v452
    %v465 = vpack.c.b16 %v455, %v454
    %v466 = vpack.c.b16 %v457, %v456
    %v467 = vpack.c.b16 %v459, %v458
    %476 = vmatprep.subr.bf16.mxu0 0
    %477 = vmatpush1.bf16.msra.mxu0 %v460
    %478 = vmatprep.subr.bf16.mxu0 0
    %479 = vmatpush1.bf16.msra.mxu0 %v461
    %480 = vmatprep.subr.bf16.mxu0 0
    %481 = vmatpush1.bf16.msra.mxu0 %v462
    %482 = vmatprep.subr.bf16.mxu0 0
    %483 = vmatpush1.bf16.msra.mxu0 %v463
    %484 = vmatprep.subr.bf16.mxu0 0
    %485 = vmatpush1.bf16.msra.mxu0 %v464
    %486 = vmatprep.subr.bf16.mxu0 0
    %487 = vmatpush1.bf16.msra.mxu0 %v465
    %488 = vmatprep.subr.bf16.mxu0 0
    %489 = vmatpush1.bf16.msra.mxu0 %v466
    %490 = vmatprep.subr.bf16.mxu0 0
    %491 = vmatpush1.bf16.msra.mxu0 %v467
    %492 = vmatprep.subr.bf16.mxu0 0
    %493 = vmatpush1.bf16.msra.mxu0 0
    %494 = vmatprep.subr.bf16.mxu0 0
    %495 = vmatpush1.bf16.msra.mxu0 0
    %496 = vmatprep.subr.bf16.mxu0 0
    %497 = vmatpush1.bf16.msra.mxu0 0
    %498 = vmatprep.subr.bf16.mxu0 0
    %499 = vmatpush1.bf16.msra.mxu0 0
    %500 = vmatprep.subr.bf16.mxu0 0
    %501 = vmatpush1.bf16.msra.mxu0 0
    %502 = vmatprep.subr.bf16.mxu0 0
    %503 = vmatpush1.bf16.msra.mxu0 0
    %504 = vmatprep.subr.bf16.mxu0 0
    %505 = vmatpush1.bf16.msra.mxu0 0
    %506 = vmatprep.subr.bf16.mxu0 0
    %507 = vmatpush1.bf16.msra.mxu0 0
    %508 = vmatprep.mubr.bf16.mxu0 0
    %509 = vmatmul.mubr.bf16.gmra.mrb[0].mxu0 %v426
    %v510 = vpop.f32.mrb[0].mxu0
    %v511 = vadd.f32 0.0, %v510
    %v512 = vpop.f32.mrb[0].mxu0
    %v513 = vpop.f32.mrb[0].mxu0
    %v514 = vadd.f32 0.0, %v513
    %v515 = vpop.f32.mrb[0].mxu0
    %516 = vdwg.mxu0
    %v517 = vadd.f32 %v386, %v511
    %v518 = vadd.f32 %v387, %v514
    %519 = vst [vmem:[#allocation3] sm:$0xff] %v517
    %520 = vst [vmem:[#allocation3 + $0x8] sm:$0xff] %v518
    %v521 = vld [vmem:[#allocation3] sm:$0xff]
    %v522 = vld [vmem:[#allocation3 + $0x8] sm:$0xff]
    %v523 = vld [vmem:[#allocation10] sm:$0x1]
    %v525 = vlaneseq
    %v526 = vshrl.u32 %v525, 7
    %v527 = vsub.s32 0, %v526
    %v528 = vrot.slane %v523, %v527
    %v530 = vadd.f32 %v521, %v528
    %v531 = vadd.f32 %v522, %v528
    %v532 = vmax.f32 %v530, 0.0
    %v533 = vmax.f32 %v531, 0.0
    %s534 = sld [smem:[#allocation4]]
    %v535 = vstv %s534
    %v536 = vmul.f32 %v535, %v532
    %v537 = vmul.f32 %v535, %v533
    %v538 = vadd.f32 %v59, %v536
    %v539 = vadd.f32 %v60, %v537
    %540 = vst [vmem:[#allocation11] sm:$0xff] %v538
    %541 = vst [vmem:[#allocation11 + $0x8] sm:$0xff] %v539
    // Predicated region
    $region30: #{_ode_block_nhwc_impl.1} parent=1 // pred_check
      _
    $region31: #{_ode_block_nhwc_impl.1} parent=1 // pred_check_branch
      %543 = sbr.rel (0) target = $region33
    $region32: #{_ode_block_nhwc_impl.1} parent=1 // pred_region
      %s545 = ssub.s32 256, 256
      %546 = vsyncadd [#allocation7], %s545
      %s547 = sshll.u32 [#allocation11], 4
      %s548 = int_to_ptr.vmem [resolvable:$true] %s547
      %553 = dma.vmem_to_hbm [thread:$0]  %s548, 256, %s4, [#allocation7], 128, 128, 8
    $region33: #{_ode_block_nhwc_impl.1} parent=1 // pred_fallthru
      _
    // Predicated region
    $region34: #{_ode_block_nhwc_impl.1} parent=1 // pred_check
      _
    $region35: #{_ode_block_nhwc_impl.1} parent=1 // pred_check_branch
      %555 = sbr.rel (0) target = $region37
    $region36: #{_ode_block_nhwc_impl.1} parent=1 // pred_region
      %556 = dma.done [#allocation7], 256
    $region37: #{_ode_block_nhwc_impl.1} parent=1 // pred_fallthru
      _
    %557 = vsyncpa [#allocation6], 1
    %558 = vsyncpa [#allocation9], 1
    %559 = vsyncpa [#allocation7], 1

</llo_original>
